<compile_context>
chip_gen: v6e
topology: v6e:2x2x1
jax: 0.10.0
libtpu: 0.0.40
codegen_flags: <defaults>
</compile_context>

<pallas_src>
import functools

import jax
import jax.numpy as jnp
from jax.experimental import pallas as pl
from jax.experimental.pallas import tpu as pltpu

PACK = 8  # batch elements packed per row of the kernel's I/O blocks


def _simple_nn_kernel(x_ref, w1_ref, b1_ref, w2_ref, b2_ref, o_ref, *,
                      chunk_rows):
    """One grid step: x_ref (tile_rows, PACK*in) -> o_ref (tile_rows, PACK*out)."""
    n_chunks = x_ref.shape[0] // chunk_rows

    def block(xc):
        # fc1 (+bias, ReLU): block-diagonal weights => 8 batch elements per
        # streamed MXU row.  f32 operands, f32 accumulation.
        h = jnp.dot(xc, w1_ref[...], preferred_element_type=jnp.float32)
        h = jnp.maximum(h + b1_ref[...], 0.0)
        # fc2 (+bias) + sigmoid, still batch-packed.
        z = jnp.dot(h, w2_ref[...], preferred_element_type=jnp.float32)
        return jax.nn.sigmoid(z + b2_ref[...])

    if n_chunks <= 1:
        o_ref[...] = block(x_ref[...].astype(jnp.float32)).astype(o_ref.dtype)
    else:
        # Inner chunk loop: the DMA tile can be huge while the live
        # intermediate h = (chunk_rows, PACK*hidden) stays a few hundred KiB.
        @pl.loop(0, n_chunks)
        def _(c):
            start = pl.multiple_of(c * chunk_rows, chunk_rows)
            rows = pl.ds(start, chunk_rows)
            o_ref[rows, :] = block(
                x_ref[rows, :].astype(jnp.float32)).astype(o_ref.dtype)


def _round_up(v: int, m: int) -> int:
    return ((v + m - 1) // m) * m


@functools.partial(jax.jit, static_argnames=("tile_batch", "batch_chunk"))
def simple_nn_forward(x, w1, b1, w2, b2, *, tile_batch=65536, batch_chunk=4096):
    """Forward pass of SimpleNN.

    x  : (B, input_size)
    w1 : (hidden, input_size)   PyTorch nn.Linear layout
    b1 : (hidden,)
    w2 : (output, hidden)
    b2 : (output,)
    returns (B, output) float32, matching SimpleNN.forward.
    """
    B, in_size = x.shape
    hidden = w1.shape[0]
    out_size = w2.shape[0]

    # Pad batch to a multiple of PACK so the (B, in) -> (B/PACK, PACK*in)
    # reshape is a zero-copy view (keep B % 8 == 0 upstream to avoid the pad copy).
    pad = (-B) % PACK
    if pad:
        x = jnp.concatenate([x, jnp.zeros((pad, in_size), x.dtype)], axis=0)
    Bp = B + pad
    R = Bp // PACK

    # Zero-copy packed view of x; tiny block-diagonal weight expansions
    # (wrapper-side work touches only the weights, never x).
    xp = x.reshape(R, PACK * in_size)
    eye = jnp.eye(PACK, dtype=jnp.float32)
    w1p = jnp.kron(eye, w1.T.astype(jnp.float32))          # (PACK*in, PACK*hidden)
    b1p = jnp.tile(b1.astype(jnp.float32), PACK).reshape(1, PACK * hidden)
    w2p = jnp.kron(eye, w2.T.astype(jnp.float32))          # (PACK*hidden, PACK*out)
    b2p = jnp.tile(b2.astype(jnp.float32), PACK).reshape(1, PACK * out_size)

    # ---- tile selection (rows = packed rows of PACK batch elements) ----
    chunk_rows = max(8, ((batch_chunk // PACK) // 8) * 8)          # multiple of 8
    max_rows = max(chunk_rows, _round_up(max(1, tile_batch // PACK), chunk_rows))
    nb = pl.cdiv(R, max_rows)
    if R >= 2 * chunk_rows:
        nb = max(nb, 2)            # make sure both v7x TensorCores get work
    tile_rows = pl.cdiv(R, nb)
    if tile_rows < R:
        tile_rows = _round_up(tile_rows, chunk_rows)   # multiple of 8 & chunk
    else:
        tile_rows = R
    nb = pl.cdiv(R, tile_rows)
    chunk_rows = min(chunk_rows, tile_rows)
    if tile_rows % chunk_rows:
        chunk_rows = tile_rows     # tiny / odd single-tile case

    flops = 2 * Bp * in_size * hidden + 2 * Bp * hidden * out_size
    bytes_accessed = (Bp * in_size * 4 + Bp * out_size * 4
                      + (w1p.size + b1p.size + w2p.size + b2p.size) * 4)
    cost = pl.CostEstimate(flops=flops, transcendentals=Bp * out_size,
                           bytes_accessed=bytes_accessed)

    kernel = functools.partial(_simple_nn_kernel, chunk_rows=chunk_rows)

    out_packed = pl.pallas_call(
        kernel,
        out_shape=jax.ShapeDtypeStruct((R, PACK * out_size), jnp.float32),
        grid=(nb,),
        in_specs=[
            pl.BlockSpec((tile_rows, PACK * in_size), lambda i: (i, 0)),  # x rows
            pl.BlockSpec(w1p.shape, lambda i: (0, 0)),   # resident weights
            pl.BlockSpec(b1p.shape, lambda i: (0, 0)),
            pl.BlockSpec(w2p.shape, lambda i: (0, 0)),
            pl.BlockSpec(b2p.shape, lambda i: (0, 0)),
        ],
        out_specs=pl.BlockSpec((tile_rows, PACK * out_size), lambda i: (i, 0)),
        compiler_params=pltpu.CompilerParams(
            dimension_semantics=("parallel",),
            vmem_limit_bytes=32 * 1024 * 1024,
        ),
        cost_estimate=cost,
    )(xp, w1p, b1p, w2p, b2p)

    out = out_packed.reshape(Bp, out_size)   # zero-copy unpack
    if pad:
        out = out[:B]
    return out


def init_params(key, input_size=10, hidden_size=32, output_size=1):
    # PyTorch-style uniform init, in PyTorch nn.Linear layout.
    k1, k2, k3, k4 = jax.random.split(key, 4)
    bound1 = 1.0 / jnp.sqrt(input_size)
    bound2 = 1.0 / jnp.sqrt(hidden_size)
    w1 = jax.random.uniform(k1, (hidden_size, input_size), jnp.float32,
                            -bound1, bound1)
    b1 = jax.random.uniform(k2, (hidden_size,), jnp.float32, -bound1, bound1)
    w2 = jax.random.uniform(k3, (output_size, hidden_size), jnp.float32,
                            -bound2, bound2)
    b2 = jax.random.uniform(k4, (output_size,), jnp.float32, -bound2, bound2)
    return w1, b1, w2, b2


if __name__ == "__main__":
    key = jax.random.PRNGKey(0)
    k_x, k_p = jax.random.split(key)

    B, input_size, hidden_size, output_size = 256, 10, 32, 1
    x = jax.random.normal(k_x, (B, input_size), jnp.float32)
    w1, b1, w2, b2 = init_params(k_p, input_size, hidden_size, output_size)

    # Pure-JAX f32 reference (same math as SimpleNN.forward).
    ref = jax.nn.sigmoid(jnp.maximum(x @ w1.T + b1, 0.0) @ w2.T + b2)

    # Small tiles: exercise the multi-step batch grid and the in-kernel chunk
    # loop even at this tiny batch.
    out_small = simple_nn_forward(x, w1, b1, w2, b2,
                                  tile_batch=128, batch_chunk=64)
    # Production defaults (single grid step at this batch size).
    out_default = simple_nn_forward(x, w1, b1, w2, b2)
    out_small, out_default = jax.block_until_ready((out_small, out_default))

    for out in (out_small, out_default):
        assert out.shape == (B, output_size), out.shape
        err = float(jnp.max(jnp.abs(out - ref)))
        assert err < 5e-3, f"mismatch vs reference: max abs err = {err}"

    print("KERNEL_OK")
</pallas_src>

<mosaic_0001>
module attributes {stable_mosaic.version = 11 : i64} {
  func.func @_simple_nn_kernel(%arg0: i32, %arg1: memref<16x80xf32, #tpu.memory_space<vmem>>, %arg2: memref<80x256xf32, #tpu.memory_space<vmem>>, %arg3: memref<1x256xf32, #tpu.memory_space<vmem>>, %arg4: memref<256x8xf32, #tpu.memory_space<vmem>>, %arg5: memref<1x8xf32, #tpu.memory_space<vmem>>, %arg6: memref<16x8xf32, #tpu.memory_space<vmem>>) attributes {dimension_semantics = [#tpu.dimension_semantics<parallel>], iteration_bounds = array<i64: 2>, scalar_prefetch = 0 : i64, scratch_operands = 0 : i64, tpu.core_type = #tpu.core_type<tc>, window_params = [{transform_indices = @transform_0, window_bounds = array<i64: 16, 80>}, {pipeline_mode = #tpu.pipeline_mode<synchronous>, transform_indices = @transform_1, window_bounds = array<i64: 80, 256>}, {pipeline_mode = #tpu.pipeline_mode<synchronous>, transform_indices = @transform_2, window_bounds = array<i64: 1, 256>}, {pipeline_mode = #tpu.pipeline_mode<synchronous>, transform_indices = @transform_3, window_bounds = array<i64: 256, 8>}, {pipeline_mode = #tpu.pipeline_mode<synchronous>, transform_indices = @transform_4, window_bounds = array<i64: 1, 8>}, {transform_indices = @transform_5, window_bounds = array<i64: 16, 8>}]} {
    %c0_i32 = arith.constant 0 : i32
    %c2_i32 = arith.constant 2 : i32
    %0 = arith.addi %c0_i32, %c2_i32 : i32
    %c1_i32 = arith.constant 1 : i32
    scf.for %arg7 = %c0_i32 to %0 step %c1_i32  : i32 {
      %c1_i32_1 = arith.constant 1 : i32
      %1 = arith.muli %arg7, %c1_i32_1 : i32
      %c0_i32_2 = arith.constant 0 : i32
      %2 = arith.addi %c0_i32_2, %1 : i32
      %c8_i32 = arith.constant 8 : i32
      %3 = arith.muli %2, %c8_i32 : i32
      %4 = tpu.assume_multiple %3, 8 : i32
      %5 = arith.index_cast %4 : i32 to index
      %c0 = arith.constant 0 : index
      %6 = vector.load %arg1[%5, %c0] : memref<16x80xf32, #tpu.memory_space<vmem>>, vector<8x80xf32>
      %c0_3 = arith.constant 0 : index
      %c0_4 = arith.constant 0 : index
      %7 = vector.load %arg2[%c0_3, %c0_4] : memref<80x256xf32, #tpu.memory_space<vmem>>, vector<80x256xf32>
      %cst = arith.constant dense<0.000000e+00> : vector<8x256xf32>
      %8 = tpu.matmul %6, %7, %cst {dimension_numbers = #tpu.dot_dimension_numbers<[1], [0], [0], [1], [0, 0, 1, 1], [], []>} : vector<8x80xf32>, vector<80x256xf32>, vector<8x256xf32> -> vector<8x256xf32>
      %c0_5 = arith.constant 0 : index
      %c0_6 = arith.constant 0 : index
      %9 = vector.load %arg3[%c0_5, %c0_6] : memref<1x256xf32, #tpu.memory_space<vmem>>, vector<1x256xf32>
      %10 = vector.broadcast %9 : vector<1x256xf32> to vector<8x256xf32>
      %11 = arith.addf %8, %10 : vector<8x256xf32>
      %cst_7 = arith.constant 0.000000e+00 : f32
      %12 = vector.broadcast %cst_7 : f32 to vector<8x256xf32>
      %13 = arith.maximumf %11, %12 : vector<8x256xf32>
      %c0_8 = arith.constant 0 : index
      %c0_9 = arith.constant 0 : index
      %14 = vector.load %arg4[%c0_8, %c0_9] : memref<256x8xf32, #tpu.memory_space<vmem>>, vector<256x8xf32>
      %cst_10 = arith.constant dense<0.000000e+00> : vector<8x8xf32>
      %15 = tpu.matmul %13, %14, %cst_10 {dimension_numbers = #tpu.dot_dimension_numbers<[1], [0], [0], [1], [0, 0, 1, 1], [], []>} : vector<8x256xf32>, vector<256x8xf32>, vector<8x8xf32> -> vector<8x8xf32>
      %c0_11 = arith.constant 0 : index
      %c0_12 = arith.constant 0 : index
      %16 = vector.load %arg5[%c0_11, %c0_12] : memref<1x8xf32, #tpu.memory_space<vmem>>, vector<1x8xf32>
      %17 = vector.broadcast %16 : vector<1x8xf32> to vector<8x8xf32>
      %18 = arith.addf %15, %17 : vector<8x8xf32>
      %19 = arith.negf %18 : vector<8x8xf32>
      %20 = math.exp %19 : vector<8x8xf32>
      %cst_13 = arith.constant 1.000000e+00 : f32
      %21 = vector.broadcast %cst_13 : f32 to vector<8x8xf32>
      %22 = arith.addf %21, %20 : vector<8x8xf32>
      %23 = arith.divf %21, %22 : vector<8x8xf32>
      %24 = arith.index_cast %4 : i32 to index
      %c0_14 = arith.constant 0 : index
      %25 = vector.load %arg6[%24, %c0_14] : memref<16x8xf32, #tpu.memory_space<vmem>>, vector<8x8xf32>
      tpu.vector_store %arg6[%24, %c0_14], %23 {strides = array<i32>} : memref<16x8xf32, #tpu.memory_space<vmem>>, vector<8x8xf32>,
    }
    %c2_i32_0 = arith.constant 2 : i32
    return
  }
  func.func @transform_0(%arg0: i32) -> (i32, i32) {
    %c0_i32 = arith.constant 0 : i32
    %c0_i32_0 = arith.constant 0 : i32
    return %arg0, %c0_i32 : i32, i32
  }
  func.func @transform_1(%arg0: i32) -> (i32, i32) {
    %c0_i32 = arith.constant 0 : i32
    %c0_i32_0 = arith.constant 0 : i32
    %c0_i32_1 = arith.constant 0 : i32
    return %c0_i32, %c0_i32_0 : i32, i32
  }
  func.func @transform_2(%arg0: i32) -> (i32, i32) {
    %c0_i32 = arith.constant 0 : i32
    %c0_i32_0 = arith.constant 0 : i32
    %c0_i32_1 = arith.constant 0 : i32
    return %c0_i32, %c0_i32_0 : i32, i32
  }
  func.func @transform_3(%arg0: i32) -> (i32, i32) {
    %c0_i32 = arith.constant 0 : i32
    %c0_i32_0 = arith.constant 0 : i32
    %c0_i32_1 = arith.constant 0 : i32
    return %c0_i32, %c0_i32_0 : i32, i32
  }
  func.func @transform_4(%arg0: i32) -> (i32, i32) {
    %c0_i32 = arith.constant 0 : i32
    %c0_i32_0 = arith.constant 0 : i32
    %c0_i32_1 = arith.constant 0 : i32
    return %c0_i32, %c0_i32_0 : i32, i32
  }
  func.func @transform_5(%arg0: i32) -> (i32, i32) {
    %c0_i32 = arith.constant 0 : i32
    %c0_i32_0 = arith.constant 0 : i32
    return %arg0, %c0_i32 : i32, i32
  }
}

</mosaic_0001>

<llo_original>
// kernel: tile.14
$region0: #{tile.14}
  %s0 = inlined_call_operand.vmem [shape: f32[8,32], index: 0, kind: input, shape index: {}]
  %s1 = inlined_call_operand.vmem [shape: f32[1,256], index: 1, kind: output, shape index: {}]
  $region1: #{tile.14} parent=0
    #allocation0 [shape = 'u8[8192]{0}', space=vmem, size = 0x2000, scoped, tag = 'scoped mem for output reshape']
    %s2 = smov 3
    %v3 = vld [vmem:[%s0] ss:$4 sm:%s2]
    %vm4 = vcmask 261120
    %5 = vst.msk [vmem:[#allocation0] ss:$8 sm:$0x3] %vm4, %v3
    %s6 = scalar_lea.vmem %s0, 3
    %s7 = smov 3
    %v8 = vld [vmem:[%s6] ss:$4 sm:%s7]
    %9 = vrot.lane.b32.xlu0 %v8, 96
    %v10 = vpop.permute.xlu0 %9
    %vm11 = vcmask 1048320
    %12 = vst.msk [vmem:[#allocation0] ss:$8 sm:$0x3] %vm11, %v10
    %s13 = scalar_lea.vmem %s0, 2
    %s14 = smov 3
    %v15 = vld [vmem:[%s13] ss:$4 sm:%s14]
    %16 = vrot.lane.b32.xlu0 %v15, 64
    %v17 = vpop.permute.xlu0 %16
    %vm18 = vcmask 785920
    %19 = vst.msk [vmem:[#allocation0] ss:$8 sm:$0x3] %vm18, %v17
    %s20 = scalar_lea.vmem %s0, 1
    %s21 = smov 3
    %v22 = vld [vmem:[%s20] ss:$4 sm:%s21]
    %23 = vrot.lane.b32.xlu0 %v22, 32
    %v24 = vpop.permute.xlu0 %23
    %vm25 = vcmask 523520
    %26 = vst.msk [vmem:[#allocation0] ss:$8 sm:$0x3] %vm25, %v24
    %s28 = sshll.u32 1, 1
    %s29 = ssub.s32 %s28, 1
    %v31 = vld [vmem:[#allocation0] sm:%s29]
    %s32 = sshll.u32 1, 1
    %s33 = ssub.s32 %s32, 1
    %34 = vst [vmem:[%s1] sm:%s33] %v31
    %s35 = scalar_lea.vmem [#allocation0], 8
    %v36 = vld [vmem:[%s35] sm:%s29]
    %s37 = sshll.u32 1, 1
    %s38 = ssub.s32 %s37, 1
    %s39 = scalar_lea.vmem %s1, 1
    %40 = vst [vmem:[%s39] sm:%s38] %v36

// kernel: simple_nn_forward.1
$region0: #{simple_nn_forward.1}
  #allocation0 [shape = 'u32[]', space=smem, size = 0x4, offset = 0x4, fixed_abs, tag = 'smem constant byte address 0x4 - core index']
  #allocation1 [shape = 'u32[144,128]{1,0:T(1,128)}', space=vmem, size = 0x12000, scoped, tag = 'internal scratch']
  %s0 = inlined_call_operand.vmem [shape: f32[32,80], index: 0, kind: input, shape index: {}]
  %s1 = inlined_call_operand.vmem [shape: f32[80,256], index: 1, kind: input, shape index: {}]
  %s2 = inlined_call_operand.vmem [shape: f32[1,256], index: 2, kind: input, shape index: {}]
  %s3 = inlined_call_operand.vmem [shape: f32[256,8], index: 3, kind: input, shape index: {}]
  %s4 = inlined_call_operand.vmem [shape: f32[1,8], index: 4, kind: input, shape index: {}]
  %s5 = inlined_call_operand.vmem [shape: f32[32,8], index: 5, kind: output, shape index: {}]
  %s6 = sld [smem:[#allocation0]]
  $region60: #{simple_nn_forward.1} parent=0
    _
  %s8 = ssub.s32 1, %s6
  %s9 = scalar_select 0, %s8, %s6
  loop: start=0, step=1, limit=4
  $region2: #{simple_nn_forward.1} parent=0 // loop_pre_header
    _
  $region3: #{simple_nn_forward.1} parent=0 // loop_header
    %s11 = sphi 0, %s15
    %p12 = scmp.ge.s32.totalorder %s11, 4
    %s21 = sphi 0, %s23
    %s24 = sphi 0, %s21
    %s25 = sphi 0, %s24
    %s41 = sphi 0, %s25
    %s45 = sphi 0, %s45
    %s47 = sphi 0, %s45
    %s48 = sphi 0, %s47
    %s62 = sphi 0, %s48
    %s66 = sphi 0, %s66
    %s68 = sphi 0, %s66
    %s69 = sphi 0, %s68
    %s83 = sphi 0, %s69
    %s87 = sphi 0, %s87
    %s89 = sphi 0, %s87
    %s90 = sphi 0, %s89
    %s104 = sphi 0, %s90
    %s108 = sphi 0, %s108
    %s110 = sphi 0, %s108
    %s111 = sphi 0, %s110
    %s125 = sphi 0, %s111
    %s131 = sphi 0, %s133
    %s134 = sphi 0, %s131
    %s135 = sphi 0, %s134
    %s151 = sphi 0, %s135
  $region4: #{simple_nn_forward.1} parent=0 // loop_header_branch
    %14 = sbr.rel (%p12) target = $region8
  $region5: #{simple_nn_forward.1} parent=0 // loop_body
    %s16 = ssub.s32 %s11, 1
    %s17 = ssub.s32 %s11, 2
    %s18 = sadd.s32 %s11, 1
    %s19 = ssub.s32 %s11, %s18
    %p20 = scmp.eq.s32.totalorder %s19, 0
    %s22 = sadd.s32 %s21, 1
    %s23 = scalar_select %p20, %s21, %s22
    %p26 = pneg %p20
    %p27 = scmp.eq.s32.totalorder %s11, 1
    %p28 = por %p26, %p27
    %p29 = scmp.ne.s32.totalorder %s21, %s24
    %p30 = scmp.eq.s32.totalorder %s11, 0
    %p31 = por %p29, %p30
    %p32 = scmp.ne.s32.totalorder %s21, %s24
    %p33 = scmp.eq.s32.totalorder %s16, 1
    %p34 = por %p32, %p33
    %p35 = scmp.ne.s32.totalorder %s24, %s25
    %p36 = scmp.eq.s32.totalorder %s16, 0
    %p37 = por %p35, %p36
    %p38 = scmp.ne.s32.totalorder %s24, %s25
    %p39 = scmp.eq.s32.totalorder %s17, 1
    %p40 = por %p38, %p39
    %p42 = scmp.ne.s32.totalorder %s25, %s41
    %p43 = scmp.eq.s32.totalorder %s17, 0
    %p44 = por %p42, %p43
    %s46 = sadd.s32 %s45, 1
    %p49 = scmp.eq.s32.totalorder %s11, 1
    %p50 = scmp.ne.s32.totalorder %s45, %s47
    %p51 = scmp.eq.s32.totalorder %s11, 0
    %p52 = por %p50, %p51
    %p53 = scmp.ne.s32.totalorder %s45, %s47
    %p54 = scmp.eq.s32.totalorder %s16, 1
    %p55 = por %p53, %p54
    %p56 = scmp.ne.s32.totalorder %s47, %s48
    %p57 = scmp.eq.s32.totalorder %s16, 0
    %p58 = por %p56, %p57
    %p59 = scmp.ne.s32.totalorder %s47, %s48
    %p60 = scmp.eq.s32.totalorder %s17, 1
    %p61 = por %p59, %p60
    %p63 = scmp.ne.s32.totalorder %s48, %s62
    %p64 = scmp.eq.s32.totalorder %s17, 0
    %p65 = por %p63, %p64
    %s67 = sadd.s32 %s66, 1
    %p70 = scmp.eq.s32.totalorder %s11, 1
    %p71 = scmp.ne.s32.totalorder %s66, %s68
    %p72 = scmp.eq.s32.totalorder %s11, 0
    %p73 = por %p71, %p72
    %p74 = scmp.ne.s32.totalorder %s66, %s68
    %p75 = scmp.eq.s32.totalorder %s16, 1
    %p76 = por %p74, %p75
    %p77 = scmp.ne.s32.totalorder %s68, %s69
    %p78 = scmp.eq.s32.totalorder %s16, 0
    %p79 = por %p77, %p78
    %p80 = scmp.ne.s32.totalorder %s68, %s69
    %p81 = scmp.eq.s32.totalorder %s17, 1
    %p82 = por %p80, %p81
    %p84 = scmp.ne.s32.totalorder %s69, %s83
    %p85 = scmp.eq.s32.totalorder %s17, 0
    %p86 = por %p84, %p85
    %s88 = sadd.s32 %s87, 1
    %p91 = scmp.eq.s32.totalorder %s11, 1
    %p92 = scmp.ne.s32.totalorder %s87, %s89
    %p93 = scmp.eq.s32.totalorder %s11, 0
    %p94 = por %p92, %p93
    %p95 = scmp.ne.s32.totalorder %s87, %s89
    %p96 = scmp.eq.s32.totalorder %s16, 1
    %p97 = por %p95, %p96
    %p98 = scmp.ne.s32.totalorder %s89, %s90
    %p99 = scmp.eq.s32.totalorder %s16, 0
    %p100 = por %p98, %p99
    %p101 = scmp.ne.s32.totalorder %s89, %s90
    %p102 = scmp.eq.s32.totalorder %s17, 1
    %p103 = por %p101, %p102
    %p105 = scmp.ne.s32.totalorder %s90, %s104
    %p106 = scmp.eq.s32.totalorder %s17, 0
    %p107 = por %p105, %p106
    %s109 = sadd.s32 %s108, 1
    %p112 = scmp.eq.s32.totalorder %s11, 1
    %p113 = scmp.ne.s32.totalorder %s108, %s110
    %p114 = scmp.eq.s32.totalorder %s11, 0
    %p115 = por %p113, %p114
    %p116 = scmp.ne.s32.totalorder %s108, %s110
    %p117 = scmp.eq.s32.totalorder %s16, 1
    %p118 = por %p116, %p117
    %p119 = scmp.ne.s32.totalorder %s110, %s111
    %p120 = scmp.eq.s32.totalorder %s16, 0
    %p121 = por %p119, %p120
    %p122 = scmp.ne.s32.totalorder %s110, %s111
    %p123 = scmp.eq.s32.totalorder %s17, 1
    %p124 = por %p122, %p123
    %p126 = scmp.ne.s32.totalorder %s111, %s125
    %p127 = scmp.eq.s32.totalorder %s17, 0
    %p128 = por %p126, %p127
    %s129 = ssub.s32 %s11, %s18
    %p130 = scmp.eq.s32.totalorder %s129, 0
    %s132 = sadd.s32 %s131, 1
    %s133 = scalar_select %p130, %s131, %s132
    %p136 = pneg %p130
    %p137 = scmp.eq.s32.totalorder %s11, 1
    %p138 = por %p136, %p137
    %p139 = scmp.ne.s32.totalorder %s131, %s134
    %p140 = scmp.eq.s32.totalorder %s11, 0
    %p141 = por %p139, %p140
    %p142 = scmp.ne.s32.totalorder %s131, %s134
    %p143 = scmp.eq.s32.totalorder %s16, 1
    %p144 = por %p142, %p143
    %p145 = scmp.ne.s32.totalorder %s134, %s135
    %p146 = scmp.eq.s32.totalorder %s16, 0
    %p147 = por %p145, %p146
    %p148 = scmp.ne.s32.totalorder %s134, %s135
    %p149 = scmp.eq.s32.totalorder %s17, 1
    %p150 = por %p148, %p149
    %p152 = scmp.ne.s32.totalorder %s135, %s151
    %p153 = scmp.eq.s32.totalorder %s17, 0
    %p154 = por %p152, %p153
    %p155 = scmp.le.s32.totalorder 1, %s11
    %p156 = scmp.lt.s32.totalorder %s11, 3
    %p157 = pnand %p155, %p156
    %p158 = pneg %p157
    // Predicated region
    $region9: #{simple_nn_forward.1} parent=5 // pred_check
      _
    $region10: #{simple_nn_forward.1} parent=5 // pred_check_branch
      %160 = sbr.rel (%p157) target = $region12
    $region11: #{simple_nn_forward.1} parent=5 // pred_region
      %s161 = ssub.s32 %s11, 1
      // Predicated region
      $region13: #{simple_nn_forward.1} parent=11 // pred_check
        %p162 = pneg %p58
      $region14: #{simple_nn_forward.1} parent=11 // pred_check_branch
        %164 = sbr.rel (%p162) target = $region16
      $region15: #{simple_nn_forward.1} parent=11 // pred_region
        _
      $region16: #{simple_nn_forward.1} parent=11 // pred_fallthru
        _
      // Predicated region
      $region17: #{simple_nn_forward.1} parent=11 // pred_check
        %p165 = pneg %p79
      $region18: #{simple_nn_forward.1} parent=11 // pred_check_branch
        %167 = sbr.rel (%p165) target = $region20
      $region19: #{simple_nn_forward.1} parent=11 // pred_region
        _
      $region20: #{simple_nn_forward.1} parent=11 // pred_fallthru
        _
      // Predicated region
      $region21: #{simple_nn_forward.1} parent=11 // pred_check
        %p168 = pneg %p100
      $region22: #{simple_nn_forward.1} parent=11 // pred_check_branch
        %170 = sbr.rel (%p168) target = $region24
      $region23: #{simple_nn_forward.1} parent=11 // pred_region
        _
      $region24: #{simple_nn_forward.1} parent=11 // pred_fallthru
        _
      // Predicated region
      $region25: #{simple_nn_forward.1} parent=11 // pred_check
        %p171 = pneg %p121
      $region26: #{simple_nn_forward.1} parent=11 // pred_check_branch
        %173 = sbr.rel (%p171) target = $region28
      $region27: #{simple_nn_forward.1} parent=11 // pred_region
        _
      $region28: #{simple_nn_forward.1} parent=11 // pred_fallthru
        _
    $region12: #{simple_nn_forward.1} parent=5 // pred_fallthru
      _
    %p174 = scmp.lt.s32.totalorder %s11, 2
    // Predicated region
    $region29: #{simple_nn_forward.1} parent=5 // pred_check
      %p175 = pneg %p174
    $region30: #{simple_nn_forward.1} parent=5 // pred_check_branch
      %177 = sbr.rel (%p175) target = $region32
    $region31: #{simple_nn_forward.1} parent=5 // pred_region
      // Predicated region
      $region33: #{simple_nn_forward.1} parent=31 // pred_check
        %p178 = pneg %p31
      $region34: #{simple_nn_forward.1} parent=31 // pred_check_branch
        %180 = sbr.rel (%p178) target = $region36
      $region35: #{simple_nn_forward.1} parent=31 // pred_region
        %s181 = smul.u32 2, %s11
        %p182 = scmp.lt.s32.totalorder %s181, 3
        %s183 = scalar_select %p182, %s181, 3
        %s184 = smul.addr %s183, 8
        %s185 = scalar_lea.vmem %s0, %s184
        %s186 = smul.u32 2, %s11
      $region36: #{simple_nn_forward.1} parent=31 // pred_fallthru
        _
    $region32: #{simple_nn_forward.1} parent=5 // pred_fallthru
      _
    %p187 = scmp.le.s32.totalorder 1, %s11
    %p188 = scmp.lt.s32.totalorder %s11, 3
    %p189 = pnand %p187, %p188
    %p190 = pneg %p189
    // Predicated region
    $region37: #{simple_nn_forward.1} parent=5 // pred_check
      _
    $region38: #{simple_nn_forward.1} parent=5 // pred_check_branch
      %192 = sbr.rel (%p189) target = $region40
    $region39: #{simple_nn_forward.1} parent=5 // pred_region
      %s193 = ssub.s32 %s11, 1
      %s194 = smul.u32 2, %s16
      %p195 = scmp.lt.s32.totalorder %s194, 3
      %s196 = scalar_select %p195, %s194, 3
      %s197 = smul.addr %s196, 8
      %s198 = scalar_lea.vmem %s0, %s197
      %p199 = pneg %p37
      %p200 = pneg %p34
      %p201 = pneg %p58
      %p202 = pneg %p55
      %p203 = pneg %p79
      %p204 = pneg %p76
      %p205 = pneg %p100
      %p206 = pneg %p97
      %p207 = pneg %p121
      %p208 = pneg %p118
      %p209 = pneg %p147
      %p210 = pneg %p144
      %s211 = smul.u32 2, %s16
      %p212 = scmp.lt.s32.totalorder %s211, 3
      %s213 = scalar_select %p212, %s211, 3
      %s214 = smul.addr %s213, 8
      %s215 = scalar_lea.vmem %s5, %s214
      %s216 = smul.u32 2, %s16
      %p217 = scmp.lt.s32.totalorder %s216, 3
      %s218 = scalar_select %p217, %s216, 3
      %s219 = smul.addr %s218, 8
      %s220 = scalar_lea.vmem %s0, %s219
      %s221 = smul.u32 2, %s16
      %s222 = smul.u32 2, %s16
      %p223 = scmp.lt.s32.totalorder %s222, 3
      %s224 = scalar_select %p223, %s222, 3
      %s225 = smul.addr %s224, 8
      %s226 = scalar_lea.vmem %s5, %s225
      %s227 = smul.u32 2, %s16
      loop: start=0, step=1, limit=2
      $region41: #{simple_nn_forward.1} parent=39 // loop_pre_header
        _
      $region42: #{simple_nn_forward.1} parent=39 // loop_header
        %s229 = sphi 0, %s233
        %p230 = scmp.ge.s32.totalorder %s229, 2
      $region43: #{simple_nn_forward.1} parent=39 // loop_header_branch
        %232 = sbr.rel (%p230) target = $region47
      $region44: #{simple_nn_forward.1} parent=39 // loop_body
        %s234 = smul.u32 %s229, 8
        %s235 = scalar_lea.vmem %s220, %s234
        %v236 = vld [vmem:[%s235] sm:$0xff]
        %v237 = vld [vmem:[%s1] sm:$0xff]
        %v238 = vld [vmem:[%s1 + $0x8] sm:$0xff]
        %v239 = vld [vmem:[%s1 + $0x10] sm:$0xff]
        %v240 = vld [vmem:[%s1 + $0x18] sm:$0xff]
        %v241 = vld [vmem:[%s1 + $0x20] sm:$0xff]
        %v242 = vld [vmem:[%s1 + $0x28] sm:$0xff]
        %v243 = vld [vmem:[%s1 + $0x30] sm:$0xff]
        %v244 = vld [vmem:[%s1 + $0x38] sm:$0xff]
        %v245 = vld [vmem:[%s1 + $0x40] sm:$0xff]
        %v246 = vld [vmem:[%s1 + $0x48] sm:$0xff]
        %v247 = vld [vmem:[%s1 + $0x50] sm:$0xff]
        %v248 = vld [vmem:[%s1 + $0x58] sm:$0xff]
        %v249 = vld [vmem:[%s1 + $0x60] sm:$0xff]
        %v250 = vld [vmem:[%s1 + $0x68] sm:$0xff]
        %v251 = vld [vmem:[%s1 + $0x70] sm:$0xff]
        %v252 = vld [vmem:[%s1 + $0x78] sm:$0xff]
        %v253 = vld [vmem:[%s1 + $0x80] sm:$0xff]
        %v254 = vld [vmem:[%s1 + $0x88] sm:$0xff]
        %v255 = vld [vmem:[%s1 + $0x90] sm:$0xff]
        %v256 = vld [vmem:[%s1 + $0x98] sm:$0xff]
        %v257 = vld [vmem:[%s2] sm:$0x3]
        %v259 = vlaneseq
        %v260 = vshrl.u32 %v259, 7
        %v261 = vsub.s32 0, %v260
        %v262 = vrot.slane %v257, %v261
        %v263 = vlaneseq
        %v264 = vshrl.u32 %v263, 7
        %v265 = vsub.s32 1, %v264
        %v266 = vrot.slane %v257, %v265
        %vm269 = vcmask 654336
        %v271 = vsel %vm269, %v236, 0
        %273 = vmatprep.subr.mxu0 0.0
        %274 = vmatpush1.msra.mxu0 0.0
        %275 = vmatprep.subr.mxu0 0.0
        %276 = vmatpush1.msra.mxu0 0.0
        %277 = vmatprep.subr.mxu0 0.0
        %278 = vmatpush1.msra.mxu0 0.0
        %279 = vmatprep.subr.mxu0 0.0
        %280 = vmatpush1.msra.mxu0 0.0
        %281 = vmatprep.subr.mxu0 0.0
        %282 = vmatpush1.msra.mxu0 0.0
        %283 = vmatprep.subr.mxu0 0.0
        %284 = vmatpush1.msra.mxu0 0.0
        %285 = vmatprep.subr.mxu0 %v256
        %286 = vmatpush1.msra.mxu0 %v255
        %287 = vmatprep.subr.mxu0 %v254
        %288 = vmatpush1.msra.mxu0 %v253
        %289 = vmatprep.subr.mxu0 %v252
        %290 = vmatpush1.msra.mxu0 %v251
        %291 = vmatprep.subr.mxu0 %v250
        %292 = vmatpush1.msra.mxu0 %v249
        %293 = vmatprep.subr.mxu0 %v248
        %294 = vmatpush1.msra.mxu0 %v247
        %295 = vmatprep.subr.mxu0 %v246
        %296 = vmatpush1.msra.mxu0 %v245
        %297 = vmatprep.subr.mxu0 %v244
        %298 = vmatpush1.msra.mxu0 %v243
        %299 = vmatprep.subr.mxu0 %v242
        %300 = vmatpush1.msra.mxu0 %v241
        %301 = vmatprep.subr.mxu0 %v240
        %302 = vmatpush1.msra.mxu0 %v239
        %303 = vmatprep.subr.mxu0 %v238
        %304 = vmatpush1.msra.mxu0 %v237
        %305 = vmatprep.subr.mxu0 0.0
        %306 = vmatpush2.msra.mxu0 0.0
        %307 = vmatprep.subr.mxu0 0.0
        %308 = vmatpush2.msra.mxu0 0.0
        %309 = vmatprep.subr.mxu0 0.0
        %310 = vmatpush2.msra.mxu0 0.0
        %311 = vmatprep.subr.mxu0 0.0
        %312 = vmatpush2.msra.mxu0 0.0
        %313 = vmatprep.subr.mxu0 0.0
        %314 = vmatpush2.msra.mxu0 0.0
        %315 = vmatprep.subr.mxu0 0.0
        %316 = vmatpush2.msra.mxu0 0.0
        %317 = vmatprep.subr.mxu0 0.0
        %318 = vmatpush2.msra.mxu0 0.0
        %319 = vmatprep.subr.mxu0 0.0
        %320 = vmatpush2.msra.mxu0 0.0
        %321 = vmatprep.subr.mxu0 0.0
        %322 = vmatpush2.msra.mxu0 0.0
        %323 = vmatprep.subr.mxu0 0.0
        %324 = vmatpush2.msra.mxu0 0.0
        %325 = vmatprep.subr.mxu0 0.0
        %326 = vmatpush2.msra.mxu0 0.0
        %327 = vmatprep.subr.mxu0 0.0
        %328 = vmatpush2.msra.mxu0 0.0
        %329 = vmatprep.subr.mxu0 0.0
        %330 = vmatpush2.msra.mxu0 0.0
        %331 = vmatprep.subr.mxu0 0.0
        %332 = vmatpush2.msra.mxu0 0.0
        %333 = vmatprep.subr.mxu0 0.0
        %334 = vmatpush2.msra.mxu0 0.0
        %335 = vmatprep.subr.mxu0 0.0
        %336 = vmatpush2.msra.mxu0 0.0
        %337 = vmatprep.mubr.f32.mxu0 0.0
        %338 = vmatmul.mubr.f32.gmra.mxu0 %v271
        %v339 = vpop.f32.mrf.mxu0
        %v340 = vadd.f32 %v262, %v339
        %v341 = vpop.f32.mrf.mxu0
        %v342 = vadd.f32 %v266, %v341
        %343 = vdwg.mxu0
        %v344 = vmax.f32 %v340, 0.0
        %v345 = vmax.f32 %v342, 0.0
        %v346 = vld [vmem:[%s3] sm:$0xff]
        %v347 = vld [vmem:[%s3 + $0x8] sm:$0xff]
        %v348 = vld [vmem:[%s3 + $0x10] sm:$0xff]
        %v349 = vld [vmem:[%s3 + $0x18] sm:$0xff]
        %v350 = vld [vmem:[%s3 + $0x20] sm:$0xff]
        %v351 = vld [vmem:[%s3 + $0x28] sm:$0xff]
        %v352 = vld [vmem:[%s3 + $0x30] sm:$0xff]
        %v353 = vld [vmem:[%s3 + $0x38] sm:$0xff]
        %v354 = vld [vmem:[%s3 + $0x40] sm:$0xff]
        %v355 = vld [vmem:[%s3 + $0x48] sm:$0xff]
        %v356 = vld [vmem:[%s3 + $0x50] sm:$0xff]
        %v357 = vld [vmem:[%s3 + $0x58] sm:$0xff]
        %v358 = vld [vmem:[%s3 + $0x60] sm:$0xff]
        %v359 = vld [vmem:[%s3 + $0x68] sm:$0xff]
        %v360 = vld [vmem:[%s3 + $0x70] sm:$0xff]
        %v361 = vld [vmem:[%s3 + $0x78] sm:$0xff]
        %v362 = vld [vmem:[%s3 + $0x80] sm:$0xff]
        %v363 = vld [vmem:[%s3 + $0x88] sm:$0xff]
        %v364 = vld [vmem:[%s3 + $0x90] sm:$0xff]
        %v365 = vld [vmem:[%s3 + $0x98] sm:$0xff]
        %v366 = vld [vmem:[%s3 + $0xa0] sm:$0xff]
        %v367 = vld [vmem:[%s3 + $0xa8] sm:$0xff]
        %v368 = vld [vmem:[%s3 + $0xb0] sm:$0xff]
        %v369 = vld [vmem:[%s3 + $0xb8] sm:$0xff]
        %v370 = vld [vmem:[%s3 + $0xc0] sm:$0xff]
        %v371 = vld [vmem:[%s3 + $0xc8] sm:$0xff]
        %v372 = vld [vmem:[%s3 + $0xd0] sm:$0xff]
        %v373 = vld [vmem:[%s3 + $0xd8] sm:$0xff]
        %v374 = vld [vmem:[%s3 + $0xe0] sm:$0xff]
        %v375 = vld [vmem:[%s3 + $0xe8] sm:$0xff]
        %v376 = vld [vmem:[%s3 + $0xf0] sm:$0xff]
        %v377 = vld [vmem:[%s3 + $0xf8] sm:$0xff]
        %v378 = vld [vmem:[%s4] sm:$0x1]
        %v380 = vlaneseq
        %v381 = vshrl.u32 %v380, 7
        %v382 = vsub.s32 0, %v381
        %v383 = vrot.slane %v378, %v382
        %385 = vmatprep.subr.mxu0 0.0
        %386 = vmatpush1.msra.mxu0 %v361
        %387 = vmatprep.subr.mxu0 0.0
        %388 = vmatpush1.msra.mxu0 %v360
        %389 = vmatprep.subr.mxu0 0.0
        %390 = vmatpush1.msra.mxu0 %v359
        %391 = vmatprep.subr.mxu0 0.0
        %392 = vmatpush1.msra.mxu0 %v358
        %393 = vmatprep.subr.mxu0 0.0
        %394 = vmatpush1.msra.mxu0 %v357
        %395 = vmatprep.subr.mxu0 0.0
        %396 = vmatpush1.msra.mxu0 %v356
        %397 = vmatprep.subr.mxu0 0.0
        %398 = vmatpush1.msra.mxu0 %v355
        %399 = vmatprep.subr.mxu0 0.0
        %400 = vmatpush1.msra.mxu0 %v354
        %401 = vmatprep.subr.mxu0 0.0
        %402 = vmatpush1.msra.mxu0 %v353
        %403 = vmatprep.subr.mxu0 0.0
        %404 = vmatpush1.msra.mxu0 %v352
        %405 = vmatprep.subr.mxu0 0.0
        %406 = vmatpush1.msra.mxu0 %v351
        %407 = vmatprep.subr.mxu0 0.0
        %408 = vmatpush1.msra.mxu0 %v350
        %409 = vmatprep.subr.mxu0 0.0
        %410 = vmatpush1.msra.mxu0 %v349
        %411 = vmatprep.subr.mxu0 0.0
        %412 = vmatpush1.msra.mxu0 %v348
        %413 = vmatprep.subr.mxu0 0.0
        %414 = vmatpush1.msra.mxu0 %v347
        %415 = vmatprep.subr.mxu0 0.0
        %416 = vmatpush1.msra.mxu0 %v346
        %417 = vmatprep.subr.mxu0 0.0
        %418 = vmatpush2.msra.mxu0 %v377
        %419 = vmatprep.subr.mxu0 0.0
        %420 = vmatpush2.msra.mxu0 %v376
        %421 = vmatprep.subr.mxu0 0.0
        %422 = vmatpush2.msra.mxu0 %v375
        %423 = vmatprep.subr.mxu0 0.0
        %424 = vmatpush2.msra.mxu0 %v374
        %425 = vmatprep.subr.mxu0 0.0
        %426 = vmatpush2.msra.mxu0 %v373
        %427 = vmatprep.subr.mxu0 0.0
        %428 = vmatpush2.msra.mxu0 %v372
        %429 = vmatprep.subr.mxu0 0.0
        %430 = vmatpush2.msra.mxu0 %v371
        %431 = vmatprep.subr.mxu0 0.0
        %432 = vmatpush2.msra.mxu0 %v370
        %433 = vmatprep.subr.mxu0 0.0
        %434 = vmatpush2.msra.mxu0 %v369
        %435 = vmatprep.subr.mxu0 0.0
        %436 = vmatpush2.msra.mxu0 %v368
        %437 = vmatprep.subr.mxu0 0.0
        %438 = vmatpush2.msra.mxu0 %v367
        %439 = vmatprep.subr.mxu0 0.0
        %440 = vmatpush2.msra.mxu0 %v366
        %441 = vmatprep.subr.mxu0 0.0
        %442 = vmatpush2.msra.mxu0 %v365
        %443 = vmatprep.subr.mxu0 0.0
        %444 = vmatpush2.msra.mxu0 %v364
        %445 = vmatprep.subr.mxu0 0.0
        %446 = vmatpush2.msra.mxu0 %v363
        %447 = vmatprep.subr.mxu0 0.0
        %448 = vmatpush2.msra.mxu0 %v362
        %449 = vmatprep.mubr.f32.mxu0 %v345
        %450 = vmatmul.mubr.f32.gmra.mxu0 %v344
        %v451 = vpop.f32.mrf.mxu0
        %v452 = vadd.f32 %v383, %v451
        %v453 = vpop.f32.mrf.mxu0
        %454 = vdwg.mxu0
        %v455 = vxor.u32 %v452, 2147483648
        %v456 = vmul.f32 %v455, 1.442695
        %v457 = vpow.pop %v456
        %v458 = vadd.f32 %v457, 1.0
        %v459 = vrcp.pop %v458
        %v460 = vmul.f32 1.0, %v459
        %s461 = scalar_lea.vmem %s226, %s234
        %vm462 = vcmask 64512
        %463 = vst.msk [vmem:[%s461] sm:$0xff] %vm462, %v460
      $region45: #{simple_nn_forward.1} parent=39 // loop_footer
        %s233 = sadd.s32 1, %s229
      $region46: #{simple_nn_forward.1} parent=39 // loop_footer_branch
        %228 = sbr.rel target = $region42
      $region47: #{simple_nn_forward.1} parent=39 // loop_exit
        _
      %s464 = smul.u32 2, %s16
      %p465 = scmp.lt.s32.totalorder %s464, 3
      %s466 = scalar_select %p465, %s464, 3
      %s467 = smul.addr %s466, 8
      %s468 = scalar_lea.vmem %s5, %s467
      // Predicated region
      $region48: #{simple_nn_forward.1} parent=39 // pred_check
        %p469 = pneg %p144
      $region49: #{simple_nn_forward.1} parent=39 // pred_check_branch
        %471 = sbr.rel (%p469) target = $region51
      $region50: #{simple_nn_forward.1} parent=39 // pred_region
        %s472 = smul.u32 2, %s16
      $region51: #{simple_nn_forward.1} parent=39 // pred_fallthru
        _
    $region40: #{simple_nn_forward.1} parent=5 // pred_fallthru
      _
    %p473 = scmp.le.s32.totalorder 2, %s11
    // Predicated region
    $region52: #{simple_nn_forward.1} parent=5 // pred_check
      %p474 = pneg %p473
    $region53: #{simple_nn_forward.1} parent=5 // pred_check_branch
      %476 = sbr.rel (%p474) target = $region55
    $region54: #{simple_nn_forward.1} parent=5 // pred_region
      %s477 = ssub.s32 %s11, 2
      // Predicated region
      $region56: #{simple_nn_forward.1} parent=54 // pred_check
        %p478 = pneg %p150
      $region57: #{simple_nn_forward.1} parent=54 // pred_check_branch
        %480 = sbr.rel (%p478) target = $region59
      $region58: #{simple_nn_forward.1} parent=54 // pred_region
        %s481 = smul.u32 2, %s17
        %p482 = scmp.lt.s32.totalorder %s481, 3
        %s483 = scalar_select %p482, %s481, 3
        %s484 = smul.addr %s483, 8
        %s485 = scalar_lea.vmem %s5, %s484
      $region59: #{simple_nn_forward.1} parent=54 // pred_fallthru
        _
    $region55: #{simple_nn_forward.1} parent=5 // pred_fallthru
      _
  $region6: #{simple_nn_forward.1} parent=0 // loop_footer
    %s15 = sadd.s32 1, %s11
  $region7: #{simple_nn_forward.1} parent=0 // loop_footer_branch
    %10 = sbr.rel target = $region3
  $region8: #{simple_nn_forward.1} parent=0 // loop_exit
    _

</llo_original>
